<compile_context>
chip_gen: v7x
topology: tpu7x:2x2x1
jax: 0.10.0
libtpu: 0.0.40
codegen_flags: <defaults>
</compile_context>

<pallas_src>
import functools

import jax
import jax.numpy as jnp
from jax.experimental import pallas as pl
from jax.experimental.pallas import tpu as pltpu


def _round_up(x, m):
    return (x + m - 1) // m * m


# ---------------------------------------------------------------------------
# Exact-erf GELU (matches torch.nn.GELU default, which uses erf not tanh).
# erf via Abramowitz & Stegun 7.1.26 (|err| < 1.5e-7), built only from
# exp / mul / add / select so it lowers cleanly to VPU+EUP inside Mosaic.
# ---------------------------------------------------------------------------
def _erf(x):
    p = 0.3275911
    a1, a2, a3, a4, a5 = (0.254829592, -0.284496736, 1.421413741,
                          -1.453152027, 1.061405429)
    sgn = jnp.where(x >= 0.0, 1.0, -1.0)
    ax = jnp.abs(x)
    t = 1.0 / (1.0 + p * ax)
    poly = ((((a5 * t + a4) * t + a3) * t + a2) * t + a1) * t
    return sgn * (1.0 - poly * jnp.exp(-ax * ax))


def _gelu_exact(x):
    return 0.5 * x * (1.0 + _erf(x * 0.7071067811865476))


def _apply_activation(x, activation):
    if activation == "gelu":
        return _gelu_exact(x)
    if activation == "relu":
        return jnp.maximum(x, 0.0)
    return x


# ---------------------------------------------------------------------------
# Shared tiling / compiler-param helpers
# ---------------------------------------------------------------------------
def _row_tiling(M, tm_request, row_align):
    # Big MXU-friendly row tiles; shrink so (a) tiny inputs don't over-pad and
    # (b) the parallel grid axis has >= 2 steps to feed both v7x TensorCores.
    tm = min(tm_request, _round_up(max(pl.cdiv(M, 2), 1), row_align))
    tm = max(tm, row_align)
    Mp = _round_up(M, tm)
    return tm, Mp


def _compiler_params(est_vmem_bytes):
    kwargs = dict(dimension_semantics=("parallel",))
    # Only override the scoped-VMEM default when the working set needs it;
    # cap at 64 MiB so the same setting is valid on v7x (64 MiB physical).
    if est_vmem_bytes > 32 * 1024 * 1024:
        kwargs["vmem_limit_bytes"] = min(int(est_vmem_bytes * 5 // 4),
                                         64 * 1024 * 1024)
    return pltpu.CompilerParams(**kwargs)


# ---------------------------------------------------------------------------
# Fused 2-layer MLP kernel:  out = gelu(x @ W1 + b1) @ W2 + b2
# Hidden activation lives in a VMEM f32 scratch; nothing intermediate hits HBM.
# ---------------------------------------------------------------------------
def _fused_mlp_kernel(x_ref, w1_ref, b1_ref, w2_ref, b2_ref, o_ref, h_ref):
    # x:(tm,D) bf16  w1:(D,F) bf16  b1:(1,F) f32  w2:(F,Do) bf16  b2:(1,Do) f32
    h = jnp.dot(x_ref[...], w1_ref[...], preferred_element_type=jnp.float32)
    h_ref[...] = _gelu_exact(h + b1_ref[...])
    out = jnp.dot(h_ref[...].astype(w2_ref.dtype), w2_ref[...],
                  preferred_element_type=jnp.float32)
    o_ref[...] = (out + b2_ref[...]).astype(o_ref.dtype)


def fused_decoder_mlp(x2d, w1, b1, w2, b2, *, tm=256,
                      compute_dtype=jnp.bfloat16):
    """Fused  gelu(x2d @ w1 + b1) @ w2 + b2  in a single pallas_call."""
    M, D = x2d.shape
    Dw, F = w1.shape
    Fw, Do = w2.shape
    assert D == Dw and F == Fw and b1.shape == (F,) and b2.shape == (Do,)
    out_dtype = x2d.dtype

    cbytes = jnp.dtype(compute_dtype).itemsize
    row_align = 16 if cbytes < 4 else 8          # bf16 sublane packing
    tm, Mp = _row_tiling(M, tm, row_align)

    xp = jnp.pad(x2d, ((0, Mp - M), (0, 0))) if Mp != M else x2d
    xb = xp.astype(compute_dtype)
    w1b = w1.astype(compute_dtype)
    w2b = w2.astype(compute_dtype)
    b1f = b1.reshape(1, F).astype(jnp.float32)
    b2f = b2.reshape(1, Do).astype(jnp.float32)

    obytes = jnp.dtype(out_dtype).itemsize
    est = (2 * tm * D * cbytes            # x tile, double-buffered
           + 2 * tm * Do * obytes         # out tile, double-buffered
           + (D * F + F * Do) * cbytes    # VMEM-resident weights
           + (F + Do) * 4                 # biases
           + tm * F * 4                   # hidden scratch
           + (2 << 20))                   # slack

    out = pl.pallas_call(
        _fused_mlp_kernel,
        out_shape=jax.ShapeDtypeStruct((Mp, Do), out_dtype),
        grid_spec=pltpu.PrefetchScalarGridSpec(
            num_scalar_prefetch=0,
            grid=(Mp // tm,),
            in_specs=[
                pl.BlockSpec((tm, D), lambda i: (i, 0)),    # x row tile
                pl.BlockSpec((D, F), lambda i: (0, 0)),     # W1 (resident)
                pl.BlockSpec((1, F), lambda i: (0, 0)),     # b1
                pl.BlockSpec((F, Do), lambda i: (0, 0)),    # W2 (resident)
                pl.BlockSpec((1, Do), lambda i: (0, 0)),    # b2
            ],
            out_specs=pl.BlockSpec((tm, Do), lambda i: (i, 0)),
            scratch_shapes=[pltpu.VMEM((tm, F), jnp.float32)],
        ),
        compiler_params=_compiler_params(est),
    )(xb, w1b, b1f, w2b, b2f)
    return out[:M] if Mp != M else out


# ---------------------------------------------------------------------------
# Generic single Linear(+activation) kernel — fallback for arbitrary layer
# lists that don't match the fused 2-layer pattern.
# ---------------------------------------------------------------------------
def _linear_kernel(x_ref, w_ref, b_ref, o_ref, *, activation):
    acc = jnp.dot(x_ref[...], w_ref[...], preferred_element_type=jnp.float32)
    acc = _apply_activation(acc + b_ref[...], activation)
    o_ref[...] = acc.astype(o_ref.dtype)


def pallas_linear(x2d, w, b, activation="none", *, tm=256,
                  compute_dtype=jnp.bfloat16):
    M, K = x2d.shape
    Kw, N = w.shape
    assert K == Kw and b.shape == (N,)
    out_dtype = x2d.dtype

    cbytes = jnp.dtype(compute_dtype).itemsize
    row_align = 16 if cbytes < 4 else 8
    tm, Mp = _row_tiling(M, tm, row_align)
    xp = jnp.pad(x2d, ((0, Mp - M), (0, 0))) if Mp != M else x2d

    obytes = jnp.dtype(out_dtype).itemsize
    est = (2 * tm * K * cbytes + 2 * tm * N * obytes + K * N * cbytes
           + N * 4 + (2 << 20))

    kernel = functools.partial(_linear_kernel, activation=activation)
    out = pl.pallas_call(
        kernel,
        out_shape=jax.ShapeDtypeStruct((Mp, N), out_dtype),
        grid_spec=pltpu.PrefetchScalarGridSpec(
            num_scalar_prefetch=0,
            grid=(Mp // tm,),
            in_specs=[
                pl.BlockSpec((tm, K), lambda i: (i, 0)),
                pl.BlockSpec((K, N), lambda i: (0, 0)),
                pl.BlockSpec((1, N), lambda i: (0, 0)),
            ],
            out_specs=pl.BlockSpec((tm, N), lambda i: (i, 0)),
        ),
        compiler_params=_compiler_params(est),
    )(xp.astype(compute_dtype), w.astype(compute_dtype),
      b.reshape(1, N).astype(jnp.float32))
    return out[:M] if Mp != M else out


# ---------------------------------------------------------------------------
# Decoder: sequential application of layers (the nn.ModuleList loop)
# ---------------------------------------------------------------------------
def make_decoder_params(key, d_model, d_ff, dtype=jnp.float32):
    """Deterministic synthetic parameters for the two-layer decoder stack."""
    k1, k2, k3, k4 = jax.random.split(key, 4)
    s1 = 1.0 / (d_model ** 0.5)
    s2 = 1.0 / (d_ff ** 0.5)
    w1 = jax.random.uniform(k1, (d_model, d_ff), dtype, -s1, s1)
    b1 = jax.random.uniform(k2, (d_ff,), dtype, -s1, s1)
    w2 = jax.random.uniform(k3, (d_ff, d_model), dtype, -s2, s2)
    b2 = jax.random.uniform(k4, (d_model,), dtype, -s2, s2)
    # Each entry mirrors one element of nn.ModuleList(layers).
    return [
        {"w": w1, "b": b1, "activation": "gelu"},
        {"w": w2, "b": b2, "activation": "none"},
    ]


def decoder_forward(params, x):
    """Decoder.forward: for layer in self.layers: x = layer(x)."""
    B, L, D = x.shape
    h = x.reshape(B * L, D)
    # Fused fast path for the canonical 2-layer FFN decoder (Linear+GELU, Linear):
    # keeps the (M, d_ff) hidden activation in VMEM instead of HBM.
    if (len(params) == 2 and params[0]["activation"] == "gelu"
            and params[1]["activation"] == "none"):
        h = fused_decoder_mlp(h, params[0]["w"], params[0]["b"],
                              params[1]["w"], params[1]["b"])
    else:
        for layer in params:
            h = pallas_linear(h, layer["w"], layer["b"], layer["activation"])
    return h.reshape(B, L, -1)


# ---------------------------------------------------------------------------
if __name__ == "__main__":
    key = jax.random.PRNGKey(0)
    kx, kp = jax.random.split(key)

    # Small but lane-dense demo shapes (feature dims multiples of 128).
    B, L, d_model, d_ff = 2, 8, 128, 256
    x = jax.random.normal(kx, (B, L, d_model), jnp.float32)
    params = make_decoder_params(kp, d_model, d_ff)

    out = decoder_forward(params, x)
    out = jax.block_until_ready(out)
    assert out.shape == (B, L, d_model)

    M = B * L
    w1, b1 = params[0]["w"], params[0]["b"]
    w2, b2 = params[1]["w"], params[1]["b"]

    # (a) Reference with the same bf16-input / f32-accumulate semantics as the
    #     kernel (tight tolerance).
    xb = x.reshape(M, d_model).astype(jnp.bfloat16)
    h = jnp.dot(xb, w1.astype(jnp.bfloat16),
                preferred_element_type=jnp.float32) + b1
    h = jax.nn.gelu(h, approximate=False).astype(jnp.bfloat16)
    ref_bf16 = (jnp.dot(h, w2.astype(jnp.bfloat16),
                        preferred_element_type=jnp.float32)
                + b2).reshape(B, L, d_model)
    assert jnp.allclose(out, ref_bf16, atol=2e-2, rtol=2e-2), \
        "mismatch vs bf16 reference"

    # (b) Full-f32 math (PyTorch-equivalent semantics, exact-erf GELU);
    #     looser tolerance because the kernel computes in bf16.
    hf = jax.nn.gelu(x.reshape(M, d_model) @ w1 + b1, approximate=False)
    ref_f32 = (hf @ w2 + b2).reshape(B, L, d_model)
    assert jnp.allclose(out, ref_f32, atol=6e-2, rtol=6e-2), \
        "mismatch vs f32 reference"

    print("KERNEL_OK")
</pallas_src>

<mosaic_0001>
module attributes {stable_mosaic.version = 11 : i64} {
  func.func @_fused_mlp_kernel(%arg0: i32, %arg1: memref<16x128xbf16, #tpu.memory_space<vmem>>, %arg2: memref<128x256xbf16, #tpu.memory_space<vmem>>, %arg3: memref<1x256xf32, #tpu.memory_space<vmem>>, %arg4: memref<256x128xbf16, #tpu.memory_space<vmem>>, %arg5: memref<1x128xf32, #tpu.memory_space<vmem>>, %arg6: memref<16x128xf32, #tpu.memory_space<vmem>>, %arg7: memref<16x256xf32, #tpu.memory_space<vmem>>) attributes {dimension_semantics = [#tpu.dimension_semantics<parallel>], iteration_bounds = array<i64: 1>, scalar_prefetch = 0 : i64, scratch_operands = 1 : i64, tpu.core_type = #tpu.core_type<tc>, window_params = [{transform_indices = @transform_0, window_bounds = array<i64: 16, 128>}, {pipeline_mode = #tpu.pipeline_mode<synchronous>, transform_indices = @transform_1, window_bounds = array<i64: 128, 256>}, {pipeline_mode = #tpu.pipeline_mode<synchronous>, transform_indices = @transform_2, window_bounds = array<i64: 1, 256>}, {pipeline_mode = #tpu.pipeline_mode<synchronous>, transform_indices = @transform_3, window_bounds = array<i64: 256, 128>}, {pipeline_mode = #tpu.pipeline_mode<synchronous>, transform_indices = @transform_4, window_bounds = array<i64: 1, 128>}, {transform_indices = @transform_5, window_bounds = array<i64: 16, 128>}]} {
    %c0 = arith.constant 0 : index
    %c0_0 = arith.constant 0 : index
    %0 = vector.load %arg1[%c0, %c0_0] : memref<16x128xbf16, #tpu.memory_space<vmem>>, vector<16x128xbf16>
    %c0_1 = arith.constant 0 : index
    %c0_2 = arith.constant 0 : index
    %1 = vector.load %arg2[%c0_1, %c0_2] : memref<128x256xbf16, #tpu.memory_space<vmem>>, vector<128x256xbf16>
    %cst = arith.constant dense<0.000000e+00> : vector<16x256xf32>
    %2 = tpu.matmul %0, %1, %cst {dimension_numbers = #tpu.dot_dimension_numbers<[1], [0], [0], [1], [0, 0, 1, 1], [], []>} : vector<16x128xbf16>, vector<128x256xbf16>, vector<16x256xf32> -> vector<16x256xf32>
    %c0_3 = arith.constant 0 : index
    %c0_4 = arith.constant 0 : index
    %3 = vector.load %arg3[%c0_3, %c0_4] : memref<1x256xf32, #tpu.memory_space<vmem>>, vector<1x256xf32>
    %4 = vector.broadcast %3 : vector<1x256xf32> to vector<16x256xf32>
    %5 = arith.addf %2, %4 : vector<16x256xf32>
    %cst_5 = arith.constant 5.000000e-01 : f32
    %6 = vector.broadcast %cst_5 : f32 to vector<16x256xf32>
    %7 = arith.mulf %6, %5 : vector<16x256xf32>
    %cst_6 = arith.constant 0.707106769 : f32
    %8 = vector.broadcast %cst_6 : f32 to vector<16x256xf32>
    %9 = arith.mulf %5, %8 : vector<16x256xf32>
    %cst_7 = arith.constant 0.000000e+00 : f32
    %10 = vector.broadcast %cst_7 : f32 to vector<16x256xf32>
    %11 = arith.cmpf oge, %9, %10 : vector<16x256xf32>
    %cst_8 = arith.constant 1.000000e+00 : f32
    %cst_9 = arith.constant -1.000000e+00 : f32
    %12 = vector.broadcast %cst_8 : f32 to vector<16x256xf32>
    %13 = vector.broadcast %cst_9 : f32 to vector<16x256xf32>
    %14 = arith.select %11, %12, %13 : vector<16x256xi1>, vector<16x256xf32>
    %15 = math.absf %9 : vector<16x256xf32>
    %cst_10 = arith.constant 0.327591091 : f32
    %16 = vector.broadcast %cst_10 : f32 to vector<16x256xf32>
    %17 = arith.mulf %16, %15 : vector<16x256xf32>
    %cst_11 = arith.constant 1.000000e+00 : f32
    %18 = vector.broadcast %cst_11 : f32 to vector<16x256xf32>
    %19 = arith.addf %18, %17 : vector<16x256xf32>
    %cst_12 = arith.constant 1.000000e+00 : f32
    %20 = vector.broadcast %cst_12 : f32 to vector<16x256xf32>
    %21 = arith.divf %20, %19 : vector<16x256xf32>
    %cst_13 = arith.constant 1.06140542 : f32
    %22 = vector.broadcast %cst_13 : f32 to vector<16x256xf32>
    %23 = arith.mulf %22, %21 : vector<16x256xf32>
    %cst_14 = arith.constant -1.45315206 : f32
    %24 = vector.broadcast %cst_14 : f32 to vector<16x256xf32>
    %25 = arith.addf %23, %24 : vector<16x256xf32>
    %26 = arith.mulf %25, %21 : vector<16x256xf32>
    %cst_15 = arith.constant 1.42141378 : f32
    %27 = vector.broadcast %cst_15 : f32 to vector<16x256xf32>
    %28 = arith.addf %26, %27 : vector<16x256xf32>
    %29 = arith.mulf %28, %21 : vector<16x256xf32>
    %cst_16 = arith.constant -0.284496725 : f32
    %30 = vector.broadcast %cst_16 : f32 to vector<16x256xf32>
    %31 = arith.addf %29, %30 : vector<16x256xf32>
    %32 = arith.mulf %31, %21 : vector<16x256xf32>
    %cst_17 = arith.constant 0.254829586 : f32
    %33 = vector.broadcast %cst_17 : f32 to vector<16x256xf32>
    %34 = arith.addf %32, %33 : vector<16x256xf32>
    %35 = arith.mulf %34, %21 : vector<16x256xf32>
    %cst_18 = arith.constant 0.000000e+00 : f32
    %36 = vector.broadcast %cst_18 : f32 to vector<16x256xf32>
    %37 = arith.subf %36, %15 : vector<16x256xf32>
    %38 = arith.mulf %37, %15 : vector<16x256xf32>
    %39 = math.exp %38 : vector<16x256xf32>
    %40 = arith.mulf %35, %39 : vector<16x256xf32>
    %cst_19 = arith.constant 1.000000e+00 : f32
    %41 = vector.broadcast %cst_19 : f32 to vector<16x256xf32>
    %42 = arith.subf %41, %40 : vector<16x256xf32>
    %43 = arith.mulf %14, %42 : vector<16x256xf32>
    %cst_20 = arith.constant 1.000000e+00 : f32
    %44 = vector.broadcast %cst_20 : f32 to vector<16x256xf32>
    %45 = arith.addf %44, %43 : vector<16x256xf32>
    %46 = arith.mulf %7, %45 : vector<16x256xf32>
    %c0_21 = arith.constant 0 : index
    %c0_22 = arith.constant 0 : index
    %47 = vector.load %arg7[%c0_21, %c0_22] : memref<16x256xf32, #tpu.memory_space<vmem>>, vector<16x256xf32>
    tpu.vector_store %arg7[%c0_21, %c0_22], %46 {strides = array<i32>} : memref<16x256xf32, #tpu.memory_space<vmem>>, vector<16x256xf32>,
    %c0_23 = arith.constant 0 : index
    %c0_24 = arith.constant 0 : index
    %48 = vector.load %arg7[%c0_23, %c0_24] : memref<16x256xf32, #tpu.memory_space<vmem>>, vector<16x256xf32>
    %49 = arith.truncf %48 : vector<16x256xf32> to vector<16x256xbf16>
    %c0_25 = arith.constant 0 : index
    %c0_26 = arith.constant 0 : index
    %50 = vector.load %arg4[%c0_25, %c0_26] : memref<256x128xbf16, #tpu.memory_space<vmem>>, vector<256x128xbf16>
    %cst_27 = arith.constant dense<0.000000e+00> : vector<16x128xf32>
    %51 = tpu.matmul %49, %50, %cst_27 {dimension_numbers = #tpu.dot_dimension_numbers<[1], [0], [0], [1], [0, 0, 1, 1], [], []>} : vector<16x256xbf16>, vector<256x128xbf16>, vector<16x128xf32> -> vector<16x128xf32>
    %c0_28 = arith.constant 0 : index
    %c0_29 = arith.constant 0 : index
    %52 = vector.load %arg5[%c0_28, %c0_29] : memref<1x128xf32, #tpu.memory_space<vmem>>, vector<1x128xf32>
    %53 = vector.broadcast %52 : vector<1x128xf32> to vector<16x128xf32>
    %54 = arith.addf %51, %53 : vector<16x128xf32>
    %c0_30 = arith.constant 0 : index
    %c0_31 = arith.constant 0 : index
    %55 = vector.load %arg6[%c0_30, %c0_31] : memref<16x128xf32, #tpu.memory_space<vmem>>, vector<16x128xf32>
    tpu.vector_store %arg6[%c0_30, %c0_31], %54 {strides = array<i32>} : memref<16x128xf32, #tpu.memory_space<vmem>>, vector<16x128xf32>,
    return
  }
  func.func @transform_0(%arg0: i32) -> (i32, i32) {
    %c0_i32 = arith.constant 0 : i32
    %c0_i32_0 = arith.constant 0 : i32
    return %arg0, %c0_i32 : i32, i32
  }
  func.func @transform_1(%arg0: i32) -> (i32, i32) {
    %c0_i32 = arith.constant 0 : i32
    %c0_i32_0 = arith.constant 0 : i32
    %c0_i32_1 = arith.constant 0 : i32
    return %c0_i32, %c0_i32_0 : i32, i32
  }
  func.func @transform_2(%arg0: i32) -> (i32, i32) {
    %c0_i32 = arith.constant 0 : i32
    %c0_i32_0 = arith.constant 0 : i32
    %c0_i32_1 = arith.constant 0 : i32
    return %c0_i32, %c0_i32_0 : i32, i32
  }
  func.func @transform_3(%arg0: i32) -> (i32, i32) {
    %c0_i32 = arith.constant 0 : i32
    %c0_i32_0 = arith.constant 0 : i32
    %c0_i32_1 = arith.constant 0 : i32
    return %c0_i32, %c0_i32_0 : i32, i32
  }
  func.func @transform_4(%arg0: i32) -> (i32, i32) {
    %c0_i32 = arith.constant 0 : i32
    %c0_i32_0 = arith.constant 0 : i32
    %c0_i32_1 = arith.constant 0 : i32
    return %c0_i32, %c0_i32_0 : i32, i32
  }
  func.func @transform_5(%arg0: i32) -> (i32, i32) {
    %c0_i32 = arith.constant 0 : i32
    %c0_i32_0 = arith.constant 0 : i32
    return %arg0, %c0_i32 : i32, i32
  }
}

</mosaic_0001>

<llo_original>
// kernel: tpu_custom_call.1
$region0: #{tpu_custom_call.1}
  #allocation0 [shape = 'u32[]', space=smem, size = 0x4, offset = 0x4, fixed_abs, tag = 'smem constant byte address 0x4 - core index']
  #allocation1 [shape = 'u32[144,128]{1,0:T(1,128)}', space=vmem, size = 0x12000, scoped, tag = 'internal scratch']
  #allocation2 [shape = 'f32[16,256]{1,0:T(8,128)}', space=vmem, size = 0x4000, scoped, tag = 'scratch operand']
  %s0 = inlined_call_operand.hbm [shape: bf16[16,128], index: 0, kind: input, shape index: {}]
  %s1 = inlined_call_operand.hbm [shape: bf16[128,256], index: 1, kind: input, shape index: {}]
  %s2 = inlined_call_operand.vmem [shape: f32[1,256], index: 2, kind: input, shape index: {}]
  %s3 = inlined_call_operand.hbm [shape: bf16[256,128], index: 3, kind: input, shape index: {}]
  %s4 = inlined_call_operand.vmem [shape: f32[1,128], index: 4, kind: input, shape index: {}]
  %s5 = inlined_call_operand.hbm [shape: f32[16,128], index: 5, kind: output, shape index: {}]
  %s6 = sld [smem:[#allocation0]]
  $region42: #{tpu_custom_call.1} parent=0
    _
  %s8 = ssub.s32 1, %s6
  %s9 = scalar_select 0, %s8, %s6
  $region1: #{tpu_custom_call.1} parent=0
    #allocation3 [shape = 'u8[4096]{0}', space=vmem, size = 0x1000, scoped, tag = 'input window, operand 0, single buffered']
    #allocation4 [shape = 's32[1]{0}', space=sflag, size = 0x4, scoped, tag = 'scoped memory for tpu_custom_call.1']
    #allocation5 [shape = 's32[1]{0}', space=sflag, size = 0x4, scoped, tag = 'scoped memory for tpu_custom_call.1']
    #allocation6 [shape = 'u8[65536]{0}', space=vmem, size = 0x10000, scoped, tag = 'input window, operand 1, single buffered']
    #allocation7 [shape = 's32[1]{0}', space=sflag, size = 0x4, scoped, tag = 'scoped memory for tpu_custom_call.1']
    #allocation8 [shape = 'u8[65536]{0}', space=vmem, size = 0x10000, scoped, tag = 'input window, operand 3, single buffered']
    #allocation9 [shape = 'u8[8192]{0}', space=vmem, size = 0x2000, scoped, tag = 'output window, operand 0, single buffered']
    %10 = vsyncpa [#allocation4], 0
    %11 = vsyncpa [#allocation7], 0
    %12 = vsyncpa [#allocation5], 0
    // Predicated region
    $region2: #{tpu_custom_call.1} parent=1 // pred_check
      _
    $region3: #{tpu_custom_call.1} parent=1 // pred_check_branch
      %14 = sbr.rel (0) target = $region5
    $region4: #{tpu_custom_call.1} parent=1 // pred_region
      %s16 = ssub.s32 128, 128
      %17 = vsyncadd [#allocation4], %s16
      %s18 = sshll.u32 [#allocation3], 4
      %s19 = int_to_ptr.vmem [resolvable:$true] %s18
      %24 = dma.hbm_to_vmem [thread:$0]  %s0, 128, %s19, [#allocation4], 64, 64, 4
    $region5: #{tpu_custom_call.1} parent=1 // pred_fallthru
      _
    // Predicated region
    $region6: #{tpu_custom_call.1} parent=1 // pred_check
      _
    $region7: #{tpu_custom_call.1} parent=1 // pred_check_branch
      %26 = sbr.rel (0) target = $region9
    $region8: #{tpu_custom_call.1} parent=1 // pred_region
      %s28 = ssub.s32 2048, 2048
      %29 = vsyncadd [#allocation7], %s28
      %s30 = sshll.u32 [#allocation6], 4
      %s31 = int_to_ptr.vmem [resolvable:$true] %s30
      %36 = dma.hbm_to_vmem [thread:$0]  %s1, 2048, %s31, [#allocation7], 128, 128, 8
    $region9: #{tpu_custom_call.1} parent=1 // pred_fallthru
      _
    // Predicated region
    $region10: #{tpu_custom_call.1} parent=1 // pred_check
      _
    $region11: #{tpu_custom_call.1} parent=1 // pred_check_branch
      %38 = sbr.rel (0) target = $region13
    $region12: #{tpu_custom_call.1} parent=1 // pred_region
      _
    $region13: #{tpu_custom_call.1} parent=1 // pred_fallthru
      _
    // Predicated region
    $region14: #{tpu_custom_call.1} parent=1 // pred_check
      _
    $region15: #{tpu_custom_call.1} parent=1 // pred_check_branch
      %40 = sbr.rel (0) target = $region17
    $region16: #{tpu_custom_call.1} parent=1 // pred_region
      %s42 = ssub.s32 2048, 2048
      %43 = vsyncadd [#allocation7], %s42
      %s44 = sshll.u32 [#allocation8], 4
      %s45 = int_to_ptr.vmem [resolvable:$true] %s44
      %50 = dma.hbm_to_vmem [thread:$0]  %s3, 2048, %s45, [#allocation7], 64, 64, 4
    $region17: #{tpu_custom_call.1} parent=1 // pred_fallthru
      _
    // Predicated region
    $region18: #{tpu_custom_call.1} parent=1 // pred_check
      _
    $region19: #{tpu_custom_call.1} parent=1 // pred_check_branch
      %52 = sbr.rel (0) target = $region21
    $region20: #{tpu_custom_call.1} parent=1 // pred_region
      _
    $region21: #{tpu_custom_call.1} parent=1 // pred_fallthru
      _
    // Predicated region
    $region22: #{tpu_custom_call.1} parent=1 // pred_check
      _
    $region23: #{tpu_custom_call.1} parent=1 // pred_check_branch
      %54 = sbr.rel (0) target = $region25
    $region24: #{tpu_custom_call.1} parent=1 // pred_region
      %55 = dma.done [#allocation4], 128
    $region25: #{tpu_custom_call.1} parent=1 // pred_fallthru
      _
    // Predicated region
    $region26: #{tpu_custom_call.1} parent=1 // pred_check
      _
    $region27: #{tpu_custom_call.1} parent=1 // pred_check_branch
      %57 = sbr.rel (0) target = $region29
    $region28: #{tpu_custom_call.1} parent=1 // pred_region
      %58 = dma.done [#allocation7], 2048
    $region29: #{tpu_custom_call.1} parent=1 // pred_fallthru
      _
    // Predicated region
    $region30: #{tpu_custom_call.1} parent=1 // pred_check
      _
    $region31: #{tpu_custom_call.1} parent=1 // pred_check_branch
      %60 = sbr.rel (0) target = $region33
    $region32: #{tpu_custom_call.1} parent=1 // pred_region
      %61 = dma.done [#allocation7], 2048
    $region33: #{tpu_custom_call.1} parent=1 // pred_fallthru
      _
    %v63 = vld [vmem:[#allocation3] sm:$0xf]
    %v64 = vld [vmem:[#allocation3 + $0x4] sm:$0xf]
    %v65 = vld [vmem:[#allocation6] sm:$0xff]
    %v66 = vld [vmem:[#allocation6 + $0x8] sm:$0xff]
    %v67 = vld [vmem:[#allocation6 + $0x10] sm:$0xff]
    %v68 = vld [vmem:[#allocation6 + $0x18] sm:$0xff]
    %v69 = vld [vmem:[#allocation6 + $0x20] sm:$0xff]
    %v70 = vld [vmem:[#allocation6 + $0x28] sm:$0xff]
    %v71 = vld [vmem:[#allocation6 + $0x30] sm:$0xff]
    %v72 = vld [vmem:[#allocation6 + $0x38] sm:$0xff]
    %v73 = vld [vmem:[#allocation6 + $0x40] sm:$0xff]
    %v74 = vld [vmem:[#allocation6 + $0x48] sm:$0xff]
    %v75 = vld [vmem:[#allocation6 + $0x50] sm:$0xff]
    %v76 = vld [vmem:[#allocation6 + $0x58] sm:$0xff]
    %v77 = vld [vmem:[#allocation6 + $0x60] sm:$0xff]
    %v78 = vld [vmem:[#allocation6 + $0x68] sm:$0xff]
    %v79 = vld [vmem:[#allocation6 + $0x70] sm:$0xff]
    %v80 = vld [vmem:[#allocation6 + $0x78] sm:$0xff]
    %v81 = vld [vmem:[%s2] sm:$0x3]
    %v83 = vlaneseq
    %v84 = vshrl.u32 %v83, 7
    %v85 = vsub.s32 0, %v84
    %v86 = vrot.slane %v81, %v85
    %v87 = vlaneseq
    %v88 = vshrl.u32 %v87, 7
    %v89 = vsub.s32 1, %v88
    %v90 = vrot.slane %v81, %v89
    %v95 = vunpack.c.l.b16 %v63
    %v96 = vunpack.c.l.b16 %v64
    %v97 = vpack.c.b16 %v96, %v95
    %v115 = vunpack.c.l.b16 %v65
    %v116 = vunpack.c.h.b16 %v65
    %v117 = vunpack.c.l.b16 %v66
    %v118 = vunpack.c.h.b16 %v66
    %v119 = vunpack.c.l.b16 %v67
    %v120 = vunpack.c.h.b16 %v67
    %v121 = vunpack.c.l.b16 %v68
    %v122 = vunpack.c.h.b16 %v68
    %v123 = vunpack.c.l.b16 %v69
    %v124 = vunpack.c.h.b16 %v69
    %v125 = vunpack.c.l.b16 %v70
    %v126 = vunpack.c.h.b16 %v70
    %v127 = vunpack.c.l.b16 %v71
    %v128 = vunpack.c.h.b16 %v71
    %v129 = vunpack.c.l.b16 %v72
    %v130 = vunpack.c.h.b16 %v72
    %v131 = vunpack.c.l.b16 %v73
    %v132 = vunpack.c.h.b16 %v73
    %v133 = vunpack.c.l.b16 %v74
    %v134 = vunpack.c.h.b16 %v74
    %v135 = vunpack.c.l.b16 %v75
    %v136 = vunpack.c.h.b16 %v75
    %v137 = vunpack.c.l.b16 %v76
    %v138 = vunpack.c.h.b16 %v76
    %v139 = vunpack.c.l.b16 %v77
    %v140 = vunpack.c.h.b16 %v77
    %v141 = vunpack.c.l.b16 %v78
    %v142 = vunpack.c.h.b16 %v78
    %v143 = vunpack.c.l.b16 %v79
    %v144 = vunpack.c.h.b16 %v79
    %v145 = vunpack.c.l.b16 %v80
    %v146 = vunpack.c.h.b16 %v80
    %v147 = vpack.c.b16 %v117, %v115
    %v148 = vpack.c.b16 %v118, %v116
    %v149 = vpack.c.b16 %v121, %v119
    %v150 = vpack.c.b16 %v122, %v120
    %v151 = vpack.c.b16 %v125, %v123
    %v152 = vpack.c.b16 %v126, %v124
    %v153 = vpack.c.b16 %v129, %v127
    %v154 = vpack.c.b16 %v130, %v128
    %v155 = vpack.c.b16 %v133, %v131
    %v156 = vpack.c.b16 %v134, %v132
    %v157 = vpack.c.b16 %v137, %v135
    %v158 = vpack.c.b16 %v138, %v136
    %v159 = vpack.c.b16 %v141, %v139
    %v160 = vpack.c.b16 %v142, %v140
    %v161 = vpack.c.b16 %v145, %v143
    %v162 = vpack.c.b16 %v146, %v144
    %179 = vmatprep.subr.bf16.mxu0 %v148
    %180 = vmatpush1.bf16.msra.mxu0 %v147
    %181 = vmatprep.subr.bf16.mxu0 %v150
    %182 = vmatpush1.bf16.msra.mxu0 %v149
    %183 = vmatprep.subr.bf16.mxu0 %v152
    %184 = vmatpush1.bf16.msra.mxu0 %v151
    %185 = vmatprep.subr.bf16.mxu0 %v154
    %186 = vmatpush1.bf16.msra.mxu0 %v153
    %187 = vmatprep.subr.bf16.mxu0 %v156
    %188 = vmatpush1.bf16.msra.mxu0 %v155
    %189 = vmatprep.subr.bf16.mxu0 %v158
    %190 = vmatpush1.bf16.msra.mxu0 %v157
    %191 = vmatprep.subr.bf16.mxu0 %v160
    %192 = vmatpush1.bf16.msra.mxu0 %v159
    %193 = vmatprep.subr.bf16.mxu0 %v162
    %194 = vmatpush1.bf16.msra.mxu0 %v161
    %195 = vmatprep.subr.bf16.mxu0 0
    %196 = vmatpush1.bf16.msra.mxu0 0
    %197 = vmatprep.subr.bf16.mxu0 0
    %198 = vmatpush1.bf16.msra.mxu0 0
    %199 = vmatprep.subr.bf16.mxu0 0
    %200 = vmatpush1.bf16.msra.mxu0 0
    %201 = vmatprep.subr.bf16.mxu0 0
    %202 = vmatpush1.bf16.msra.mxu0 0
    %203 = vmatprep.subr.bf16.mxu0 0
    %204 = vmatpush1.bf16.msra.mxu0 0
    %205 = vmatprep.subr.bf16.mxu0 0
    %206 = vmatpush1.bf16.msra.mxu0 0
    %207 = vmatprep.subr.bf16.mxu0 0
    %208 = vmatpush1.bf16.msra.mxu0 0
    %209 = vmatprep.subr.bf16.mxu0 0
    %210 = vmatpush1.bf16.msra.mxu0 0
    %211 = vmatprep.mubr.bf16.mxu0 0
    %212 = vmatmul.mubr.bf16.gmra.mrb[0].mxu0 %v97
    %v213 = vpop.f32.mrb[0].mxu0
    %v214 = vadd.f32 %v86, %v213
    %v215 = vpop.f32.mrb[0].mxu0
    %v216 = vadd.f32 %v90, %v215
    %v217 = vpop.f32.mrb[0].mxu0
    %v218 = vadd.f32 %v86, %v217
    %v219 = vpop.f32.mrb[0].mxu0
    %v220 = vadd.f32 %v90, %v219
    %221 = vdwg.mxu0
    %v222 = vmul.f32 %v214, 0.5
    %v223 = vmul.f32 %v216, 0.5
    %v224 = vmul.f32 %v218, 0.5
    %v225 = vmul.f32 %v220, 0.5
    %v226 = vmul.f32 %v214, 0.70710677
    %v227 = vmul.f32 %v216, 0.70710677
    %v228 = vmul.f32 %v218, 0.70710677
    %v229 = vmul.f32 %v220, 0.70710677
    %vm230 = vcmp.ge.f32.partialorder %v226, 0.0
    %vm231 = vcmp.ge.f32.partialorder %v227, 0.0
    %vm232 = vcmp.ge.f32.partialorder %v228, 0.0
    %vm233 = vcmp.ge.f32.partialorder %v229, 0.0
    %v234 = vsel %vm230, 1.0, -1.0
    %v235 = vsel %vm231, 1.0, -1.0
    %v236 = vsel %vm232, 1.0, -1.0
    %v237 = vsel %vm233, 1.0, -1.0
    %v238 = vand.u32 2147483647, %v226
    %v239 = vand.u32 2147483647, %v227
    %v240 = vand.u32 2147483647, %v228
    %v241 = vand.u32 2147483647, %v229
    %v242 = vmul.f32 %v238, 0.3275911
    %v243 = vmul.f32 %v239, 0.3275911
    %v244 = vmul.f32 %v240, 0.3275911
    %v245 = vmul.f32 %v241, 0.3275911
    %v246 = vadd.f32 %v242, 1.0
    %v247 = vadd.f32 %v243, 1.0
    %v248 = vadd.f32 %v244, 1.0
    %v249 = vadd.f32 %v245, 1.0
    %v250 = vrcp.pop %v246
    %v251 = vmul.f32 1.0, %v250
    %v252 = vrcp.pop %v247
    %v253 = vmul.f32 1.0, %v252
    %v254 = vrcp.pop %v248
    %v255 = vmul.f32 1.0, %v254
    %v256 = vrcp.pop %v249
    %v257 = vmul.f32 1.0, %v256
    %v258 = vmul.f32 %v251, 1.0614054
    %v259 = vmul.f32 %v253, 1.0614054
    %v260 = vmul.f32 %v255, 1.0614054
    %v261 = vmul.f32 %v257, 1.0614054
    %v262 = vadd.f32 %v258, -1.4531521
    %v263 = vadd.f32 %v259, -1.4531521
    %v264 = vadd.f32 %v260, -1.4531521
    %v265 = vadd.f32 %v261, -1.4531521
    %v266 = vmul.f32 %v262, %v251
    %v267 = vmul.f32 %v263, %v253
    %v268 = vmul.f32 %v264, %v255
    %v269 = vmul.f32 %v265, %v257
    %v270 = vadd.f32 %v266, 1.4214138
    %v271 = vadd.f32 %v267, 1.4214138
    %v272 = vadd.f32 %v268, 1.4214138
    %v273 = vadd.f32 %v269, 1.4214138
    %v274 = vmul.f32 %v270, %v251
    %v275 = vmul.f32 %v271, %v253
    %v276 = vmul.f32 %v272, %v255
    %v277 = vmul.f32 %v273, %v257
    %v278 = vadd.f32 %v274, -0.28449672
    %v279 = vadd.f32 %v275, -0.28449672
    %v280 = vadd.f32 %v276, -0.28449672
    %v281 = vadd.f32 %v277, -0.28449672
    %v282 = vmul.f32 %v278, %v251
    %v283 = vmul.f32 %v279, %v253
    %v284 = vmul.f32 %v280, %v255
    %v285 = vmul.f32 %v281, %v257
    %v286 = vadd.f32 %v282, 0.2548296
    %v287 = vadd.f32 %v283, 0.2548296
    %v288 = vadd.f32 %v284, 0.2548296
    %v289 = vadd.f32 %v285, 0.2548296
    %v290 = vmul.f32 %v286, %v251
    %v291 = vmul.f32 %v287, %v253
    %v292 = vmul.f32 %v288, %v255
    %v293 = vmul.f32 %v289, %v257
    %v294 = vsub.f32 0.0, %v238
    %v295 = vsub.f32 0.0, %v239
    %v296 = vsub.f32 0.0, %v240
    %v297 = vsub.f32 0.0, %v241
    %v298 = vmul.f32 %v294, %v238
    %v299 = vmul.f32 %v295, %v239
    %v300 = vmul.f32 %v296, %v240
    %v301 = vmul.f32 %v297, %v241
    %v302 = vmul.f32 %v298, 1.442695
    %v303 = vpow.pop %v302
    %v304 = vmul.f32 %v299, 1.442695
    %v305 = vpow.pop %v304
    %v306 = vmul.f32 %v300, 1.442695
    %v307 = vpow.pop %v306
    %v308 = vmul.f32 %v301, 1.442695
    %v309 = vpow.pop %v308
    %v310 = vmul.f32 %v290, %v303
    %v311 = vmul.f32 %v291, %v305
    %v312 = vmul.f32 %v292, %v307
    %v313 = vmul.f32 %v293, %v309
    %v314 = vsub.f32 1.0, %v310
    %v315 = vsub.f32 1.0, %v311
    %v316 = vsub.f32 1.0, %v312
    %v317 = vsub.f32 1.0, %v313
    %v318 = vmul.f32 %v234, %v314
    %v319 = vmul.f32 %v235, %v315
    %v320 = vmul.f32 %v236, %v316
    %v321 = vmul.f32 %v237, %v317
    %v322 = vadd.f32 %v318, 1.0
    %v323 = vadd.f32 %v319, 1.0
    %v324 = vadd.f32 %v320, 1.0
    %v325 = vadd.f32 %v321, 1.0
    %v326 = vmul.f32 %v222, %v322
    %v327 = vmul.f32 %v223, %v323
    %v328 = vmul.f32 %v224, %v324
    %v329 = vmul.f32 %v225, %v325
    %330 = vst [vmem:[#allocation2] sm:$0xff] %v326
    %331 = vst [vmem:[#allocation2 + $0x8] sm:$0xff] %v327
    %332 = vst [vmem:[#allocation2 + $0x10] sm:$0xff] %v328
    %333 = vst [vmem:[#allocation2 + $0x18] sm:$0xff] %v329
    %v334 = vld [vmem:[#allocation2] sm:$0xff]
    %v335 = vld [vmem:[#allocation2 + $0x8] sm:$0xff]
    %v336 = vld [vmem:[#allocation2 + $0x10] sm:$0xff]
    %v337 = vld [vmem:[#allocation2 + $0x18] sm:$0xff]
    %v338 = vpack.c.bf16 %v336, %v334
    %v339 = vpack.c.bf16 %v337, %v335
    %v340 = vld [vmem:[#allocation8] sm:$0xf]
    %v341 = vld [vmem:[#allocation8 + $0x4] sm:$0xf]
    %v342 = vld [vmem:[#allocation8 + $0x8] sm:$0xf]
    %v343 = vld [vmem:[#allocation8 + $0xc] sm:$0xf]
    %v344 = vld [vmem:[#allocation8 + $0x10] sm:$0xf]
    %v345 = vld [vmem:[#allocation8 + $0x14] sm:$0xf]
    %v346 = vld [vmem:[#allocation8 + $0x18] sm:$0xf]
    %v347 = vld [vmem:[#allocation8 + $0x1c] sm:$0xf]
    %v348 = vld [vmem:[#allocation8 + $0x20] sm:$0xf]
    %v349 = vld [vmem:[#allocation8 + $0x24] sm:$0xf]
    %v350 = vld [vmem:[#allocation8 + $0x28] sm:$0xf]
    %v351 = vld [vmem:[#allocation8 + $0x2c] sm:$0xf]
    %v352 = vld [vmem:[#allocation8 + $0x30] sm:$0xf]
    %v353 = vld [vmem:[#allocation8 + $0x34] sm:$0xf]
    %v354 = vld [vmem:[#allocation8 + $0x38] sm:$0xf]
    %v355 = vld [vmem:[#allocation8 + $0x3c] sm:$0xf]
    %v356 = vld [vmem:[#allocation8 + $0x40] sm:$0xf]
    %v357 = vld [vmem:[#allocation8 + $0x44] sm:$0xf]
    %v358 = vld [vmem:[#allocation8 + $0x48] sm:$0xf]
    %v359 = vld [vmem:[#allocation8 + $0x4c] sm:$0xf]
    %v360 = vld [vmem:[#allocation8 + $0x50] sm:$0xf]
    %v361 = vld [vmem:[#allocation8 + $0x54] sm:$0xf]
    %v362 = vld [vmem:[#allocation8 + $0x58] sm:$0xf]
    %v363 = vld [vmem:[#allocation8 + $0x5c] sm:$0xf]
    %v364 = vld [vmem:[#allocation8 + $0x60] sm:$0xf]
    %v365 = vld [vmem:[#allocation8 + $0x64] sm:$0xf]
    %v366 = vld [vmem:[#allocation8 + $0x68] sm:$0xf]
    %v367 = vld [vmem:[#allocation8 + $0x6c] sm:$0xf]
    %v368 = vld [vmem:[#allocation8 + $0x70] sm:$0xf]
    %v369 = vld [vmem:[#allocation8 + $0x74] sm:$0xf]
    %v370 = vld [vmem:[#allocation8 + $0x78] sm:$0xf]
    %v371 = vld [vmem:[#allocation8 + $0x7c] sm:$0xf]
    %v372 = vld [vmem:[%s4] sm:$0x1]
    %v374 = vlaneseq
    %v375 = vshrl.u32 %v374, 7
    %v376 = vsub.s32 0, %v375
    %v377 = vrot.slane %v372, %v376
    %v411 = vunpack.c.l.b16 %v340
    %v412 = vunpack.c.l.b16 %v341
    %v413 = vunpack.c.l.b16 %v342
    %v414 = vunpack.c.l.b16 %v343
    %v415 = vunpack.c.l.b16 %v344
    %v416 = vunpack.c.l.b16 %v345
    %v417 = vunpack.c.l.b16 %v346
    %v418 = vunpack.c.l.b16 %v347
    %v419 = vunpack.c.l.b16 %v348
    %v420 = vunpack.c.l.b16 %v349
    %v421 = vunpack.c.l.b16 %v350
    %v422 = vunpack.c.l.b16 %v351
    %v423 = vunpack.c.l.b16 %v352
    %v424 = vunpack.c.l.b16 %v353
    %v425 = vunpack.c.l.b16 %v354
    %v426 = vunpack.c.l.b16 %v355
    %v427 = vunpack.c.l.b16 %v356
    %v428 = vunpack.c.l.b16 %v357
    %v429 = vunpack.c.l.b16 %v358
    %v430 = vunpack.c.l.b16 %v359
    %v431 = vunpack.c.l.b16 %v360
    %v432 = vunpack.c.l.b16 %v361
    %v433 = vunpack.c.l.b16 %v362
    %v434 = vunpack.c.l.b16 %v363
    %v435 = vunpack.c.l.b16 %v364
    %v436 = vunpack.c.l.b16 %v365
    %v437 = vunpack.c.l.b16 %v366
    %v438 = vunpack.c.l.b16 %v367
    %v439 = vunpack.c.l.b16 %v368
    %v440 = vunpack.c.l.b16 %v369
    %v441 = vunpack.c.l.b16 %v370
    %v442 = vunpack.c.l.b16 %v371
    %v443 = vpack.c.b16 %v412, %v411
    %v444 = vpack.c.b16 %v414, %v413
    %v445 = vpack.c.b16 %v416, %v415
    %v446 = vpack.c.b16 %v418, %v417
    %v447 = vpack.c.b16 %v420, %v419
    %v448 = vpack.c.b16 %v422, %v421
    %v449 = vpack.c.b16 %v424, %v423
    %v450 = vpack.c.b16 %v426, %v425
    %v451 = vpack.c.b16 %v428, %v427
    %v452 = vpack.c.b16 %v430, %v429
    %v453 = vpack.c.b16 %v432, %v431
    %v454 = vpack.c.b16 %v434, %v433
    %v455 = vpack.c.b16 %v436, %v435
    %v456 = vpack.c.b16 %v438, %v437
    %v457 = vpack.c.b16 %v440, %v439
    %v458 = vpack.c.b16 %v442, %v441
    %475 = vmatprep.subr.bf16.mxu0 0
    %476 = vmatpush1.bf16.msra.mxu0 %v443
    %477 = vmatprep.subr.bf16.mxu0 0
    %478 = vmatpush1.bf16.msra.mxu0 %v444
    %479 = vmatprep.subr.bf16.mxu0 0
    %480 = vmatpush1.bf16.msra.mxu0 %v445
    %481 = vmatprep.subr.bf16.mxu0 0
    %482 = vmatpush1.bf16.msra.mxu0 %v446
    %483 = vmatprep.subr.bf16.mxu0 0
    %484 = vmatpush1.bf16.msra.mxu0 %v447
    %485 = vmatprep.subr.bf16.mxu0 0
    %486 = vmatpush1.bf16.msra.mxu0 %v448
    %487 = vmatprep.subr.bf16.mxu0 0
    %488 = vmatpush1.bf16.msra.mxu0 %v449
    %489 = vmatprep.subr.bf16.mxu0 0
    %490 = vmatpush1.bf16.msra.mxu0 %v450
    %491 = vmatprep.subr.bf16.mxu0 0
    %492 = vmatpush1.bf16.msra.mxu0 %v451
    %493 = vmatprep.subr.bf16.mxu0 0
    %494 = vmatpush1.bf16.msra.mxu0 %v452
    %495 = vmatprep.subr.bf16.mxu0 0
    %496 = vmatpush1.bf16.msra.mxu0 %v453
    %497 = vmatprep.subr.bf16.mxu0 0
    %498 = vmatpush1.bf16.msra.mxu0 %v454
    %499 = vmatprep.subr.bf16.mxu0 0
    %500 = vmatpush1.bf16.msra.mxu0 %v455
    %501 = vmatprep.subr.bf16.mxu0 0
    %502 = vmatpush1.bf16.msra.mxu0 %v456
    %503 = vmatprep.subr.bf16.mxu0 0
    %504 = vmatpush1.bf16.msra.mxu0 %v457
    %505 = vmatprep.subr.bf16.mxu0 0
    %506 = vmatpush1.bf16.msra.mxu0 %v458
    %507 = vmatprep.mubr.bf16.mxu0 %v339
    %508 = vmatmul.mubr.bf16.gmra.mrb[0].mxu0 %v338
    %v509 = vpop.f32.mrb[0].mxu0
    %v510 = vadd.f32 %v377, %v509
    %v511 = vpop.f32.mrb[0].mxu0
    %v512 = vpop.f32.mrb[0].mxu0
    %v513 = vadd.f32 %v377, %v512
    %v514 = vpop.f32.mrb[0].mxu0
    %515 = vdwg.mxu0
    %516 = vst [vmem:[#allocation9] sm:$0xff] %v510
    %517 = vst [vmem:[#allocation9 + $0x8] sm:$0xff] %v513
    // Predicated region
    $region34: #{tpu_custom_call.1} parent=1 // pred_check
      _
    $region35: #{tpu_custom_call.1} parent=1 // pred_check_branch
      %519 = sbr.rel (0) target = $region37
    $region36: #{tpu_custom_call.1} parent=1 // pred_region
      %s521 = ssub.s32 256, 256
      %522 = vsyncadd [#allocation5], %s521
      %s523 = sshll.u32 [#allocation9], 4
      %s524 = int_to_ptr.vmem [resolvable:$true] %s523
      %529 = dma.vmem_to_hbm [thread:$0]  %s524, 256, %s5, [#allocation5], 128, 128, 8
    $region37: #{tpu_custom_call.1} parent=1 // pred_fallthru
      _
    // Predicated region
    $region38: #{tpu_custom_call.1} parent=1 // pred_check
      _
    $region39: #{tpu_custom_call.1} parent=1 // pred_check_branch
      %531 = sbr.rel (0) target = $region41
    $region40: #{tpu_custom_call.1} parent=1 // pred_region
      %532 = dma.done [#allocation5], 256
    $region41: #{tpu_custom_call.1} parent=1 // pred_fallthru
      _
    %533 = vsyncpa [#allocation4], 1
    %534 = vsyncpa [#allocation7], 1
    %535 = vsyncpa [#allocation5], 1

</llo_original>
